<compile_context>
chip_gen: v5e
topology: v5e:2x2
jax: 0.10.0
libtpu: 0.0.40
codegen_flags: <defaults>
</compile_context>

<pallas_src>
import jax
import jax.numpy as jnp
from jax.experimental import pallas as pl
from jax.experimental.pallas import tpu as pltpu

# Module hyperparameters (from the PyTorch script)
LOOK_BACK = 7
INPUT_SIZE = LOOK_BACK      # 7
HIDDEN1 = 64
HIDDEN2 = 32
OUTPUT_SIZE = 1

_LANE = 128                 # TPU lane width


def mlp_kernel(xt_ref, w1_ref, b1_ref, w2_ref, b2_ref, w4_ref, b4_ref, ot_ref):
    """One batch tile, transposed (batch-on-lanes) orientation.

    xt_ref : [INPUT_SIZE, tb]   f32  (cast to bf16 in-kernel)
    w*_ref : [out, in]          bf16 (PyTorch nn.Linear layout, VMEM-resident)
    b*_ref : [out, 1]           f32
    ot_ref : [OUTPUT_SIZE, tb]  f32

    Computes out^T = W4 @ relu(W2 @ relu(W1 @ x^T + b1) + b2) + b4, i.e. the
    transpose of relu(relu(x@W1^T+b1)@W2^T+b2)@W4^T+b4 (the PyTorch module).
    """
    xt = xt_ref[...].astype(jnp.bfloat16)                           # [7,  tb]

    # fc1 + ReLU (f32 accumulation on the MXU)
    h1 = jnp.dot(w1_ref[...], xt, preferred_element_type=jnp.float32)
    h1 = jnp.maximum(h1 + b1_ref[...], 0.0)                         # [64, tb]

    # fc2 + ReLU
    h2 = jnp.dot(w2_ref[...], h1.astype(jnp.bfloat16),
                 preferred_element_type=jnp.float32)
    h2 = jnp.maximum(h2 + b2_ref[...], 0.0)                         # [32, tb]

    # fc4 (no activation)
    out = jnp.dot(w4_ref[...], h2.astype(jnp.bfloat16),
                  preferred_element_type=jnp.float32)
    ot_ref[...] = (out + b4_ref[...]).astype(ot_ref.dtype)          # [1,  tb]


def _pick_batch_tile(batch, block_b, min_steps=2):
    """Lane-aligned batch tile; keeps >= min_steps grid steps when possible
    so the 'parallel' batch axis feeds both TensorCores on v7x."""
    if batch <= _LANE:
        return batch                          # single (possibly partial) block
    tb = min(block_b, pl.cdiv(batch, _LANE) * _LANE)
    tb = max(_LANE, (tb // _LANE) * _LANE)    # multiple of 128 lanes
    cap = pl.cdiv(batch, min_steps * _LANE) * _LANE
    return max(_LANE, min(tb, cap))


def mlp_forward(x, params, *, block_b=16 * 1024,
                vmem_limit_bytes=48 * 1024 * 1024):
    """x: [B, INPUT_SIZE] f32.  params: output of prepare_params()."""
    w1, b1, w2, b2, w4, b4 = params
    B = x.shape[0]

    # Batch-on-lanes: feed x^T.  Single XLA transpose (disappears entirely if
    # the producer emits x already transposed).  No cast / no pad here: the
    # bf16 cast happens in-kernel and ragged tails use Pallas block clipping.
    xt = x.T                                                        # [7, B] f32

    tb = _pick_batch_tile(B, block_b)
    grid = (pl.cdiv(B, tb),)

    # Weights / biases: full-array blocks, same block index every step
    # -> VMEM-resident across the whole grid.
    resident = lambda a: pl.BlockSpec(a.shape, lambda i: (0,) * a.ndim)

    out_t = pl.pallas_call(
        mlp_kernel,
        out_shape=jax.ShapeDtypeStruct((OUTPUT_SIZE, B), jnp.float32),
        grid_spec=pltpu.PrefetchScalarGridSpec(
            num_scalar_prefetch=0,
            grid=grid,
            in_specs=[
                pl.BlockSpec((INPUT_SIZE, tb), lambda i: (0, i)),   # x^T, lane-tiled
                resident(w1), resident(b1),
                resident(w2), resident(b2),
                resident(w4), resident(b4),
            ],
            out_specs=pl.BlockSpec((OUTPUT_SIZE, tb), lambda i: (0, i)),  # lane-dense
        ),
        compiler_params=pltpu.CompilerParams(
            dimension_semantics=("parallel",),   # megacore sharding on v7x
            vmem_limit_bytes=vmem_limit_bytes,   # v5e default scoped limit is 16 MiB
        ),
    )(xt, w1, b1, w2, b2, w4, b4)

    # [1, B] -> [B, 1] (cheap reshape), matching the module's output layout.
    return out_t.reshape(B, OUTPUT_SIZE)


def init_params(key):
    """nn.Linear-style init, PyTorch layout: W [out, in], b [out], all f32."""
    def linear(k, fan_in, fan_out):
        kw, kb = jax.random.split(k)
        bound = 1.0 / jnp.sqrt(jnp.float32(fan_in))
        w = jax.random.uniform(kw, (fan_out, fan_in), jnp.float32, -bound, bound)
        b = jax.random.uniform(kb, (fan_out,), jnp.float32, -bound, bound)
        return w, b

    k1, k2, k3 = jax.random.split(key, 3)
    w1, b1 = linear(k1, INPUT_SIZE, HIDDEN1)
    w2, b2 = linear(k2, HIDDEN1, HIDDEN2)
    w4, b4 = linear(k3, HIDDEN2, OUTPUT_SIZE)
    return (w1, b1, w2, b2, w4, b4)


def prepare_params(raw, compute_dtype=jnp.bfloat16):
    """Cast the (tiny) weights to the MXU dtype and reshape biases to columns.
    Done ONCE, hoisted out of the per-call path."""
    w1, b1, w2, b2, w4, b4 = raw
    return (w1.astype(compute_dtype), b1.reshape(-1, 1).astype(jnp.float32),
            w2.astype(compute_dtype), b2.reshape(-1, 1).astype(jnp.float32),
            w4.astype(compute_dtype), b4.reshape(-1, 1).astype(jnp.float32))


def ref_forward(x, raw, compute_dtype=jnp.bfloat16):
    """Plain-JAX reference (standard orientation) with identical quantization:
    bf16 matmul operands, f32 accumulation / bias / ReLU."""
    w1, b1, w2, b2, w4, b4 = raw
    xq = x.astype(compute_dtype)
    h1 = jnp.maximum(
        jnp.dot(xq, w1.T.astype(compute_dtype),
                preferred_element_type=jnp.float32) + b1, 0.0)
    h2 = jnp.maximum(
        jnp.dot(h1.astype(compute_dtype), w2.T.astype(compute_dtype),
                preferred_element_type=jnp.float32) + b2, 0.0)
    return jnp.dot(h2.astype(compute_dtype), w4.T.astype(compute_dtype),
                   preferred_element_type=jnp.float32) + b4


if __name__ == "__main__":
    key = jax.random.PRNGKey(0)
    kx1, kx2, kp = jax.random.split(key, 3)
    raw = init_params(kp)
    params = prepare_params(raw)   # weight cast hoisted: done once, reused below

    # Case 1: tiny batch -> single (partial-lane-width) block, grid = 1.
    B1 = 8
    x1 = jax.random.normal(kx1, (B1, INPUT_SIZE), jnp.float32)
    out1 = jax.block_until_ready(mlp_forward(x1, params))
    ref1 = ref_forward(x1, raw)
    assert out1.shape == (B1, OUTPUT_SIZE)
    assert jnp.allclose(out1, ref1, atol=2e-3, rtol=2e-3), \
        float(jnp.max(jnp.abs(out1 - ref1)))

    # Case 2: batch not a multiple of the tile -> 3 grid steps + clipped tail
    # block (no explicit padding, out_shape is exactly B).
    B2 = 300
    x2 = jax.random.normal(kx2, (B2, INPUT_SIZE), jnp.float32)
    out2 = jax.block_until_ready(mlp_forward(x2, params, block_b=128))
    ref2 = ref_forward(x2, raw)
    assert out2.shape == (B2, OUTPUT_SIZE)
    assert jnp.allclose(out2, ref2, atol=2e-3, rtol=2e-3), \
        float(jnp.max(jnp.abs(out2 - ref2)))

    print("KERNEL_OK")
</pallas_src>

<mosaic_0001>
module attributes {stable_mosaic.version = 11 : i64} {
  func.func @mlp_kernel(%arg0: i32, %arg1: memref<7x8xf32, #tpu.memory_space<vmem>>, %arg2: memref<64x7xbf16, #tpu.memory_space<vmem>>, %arg3: memref<64x1xf32, #tpu.memory_space<vmem>>, %arg4: memref<32x64xbf16, #tpu.memory_space<vmem>>, %arg5: memref<32x1xf32, #tpu.memory_space<vmem>>, %arg6: memref<1x32xbf16, #tpu.memory_space<vmem>>, %arg7: memref<1x1xf32, #tpu.memory_space<vmem>>, %arg8: memref<1x8xf32, #tpu.memory_space<vmem>>) attributes {dimension_semantics = [#tpu.dimension_semantics<parallel>], iteration_bounds = array<i64: 1>, scalar_prefetch = 0 : i64, scratch_operands = 0 : i64, tpu.core_type = #tpu.core_type<tc>, window_params = [{transform_indices = @transform_0, window_bounds = array<i64: 7, 8>}, {pipeline_mode = #tpu.pipeline_mode<synchronous>, transform_indices = @transform_1, window_bounds = array<i64: 64, 7>}, {pipeline_mode = #tpu.pipeline_mode<synchronous>, transform_indices = @transform_2, window_bounds = array<i64: 64, 1>}, {pipeline_mode = #tpu.pipeline_mode<synchronous>, transform_indices = @transform_3, window_bounds = array<i64: 32, 64>}, {pipeline_mode = #tpu.pipeline_mode<synchronous>, transform_indices = @transform_4, window_bounds = array<i64: 32, 1>}, {pipeline_mode = #tpu.pipeline_mode<synchronous>, transform_indices = @transform_5, window_bounds = array<i64: 1, 32>}, {pipeline_mode = #tpu.pipeline_mode<synchronous>, transform_indices = @transform_6, window_bounds = array<i64: 1, 1>}, {transform_indices = @transform_7, window_bounds = array<i64: 1, 8>}]} {
    %c0 = arith.constant 0 : index
    %c0_0 = arith.constant 0 : index
    %0 = vector.load %arg1[%c0, %c0_0] : memref<7x8xf32, #tpu.memory_space<vmem>>, vector<7x8xf32>
    %1 = arith.truncf %0 : vector<7x8xf32> to vector<7x8xbf16>
    %c0_1 = arith.constant 0 : index
    %c0_2 = arith.constant 0 : index
    %2 = vector.load %arg2[%c0_1, %c0_2] : memref<64x7xbf16, #tpu.memory_space<vmem>>, vector<64x7xbf16>
    %cst = arith.constant dense<0.000000e+00> : vector<64x8xf32>
    %3 = tpu.matmul %2, %1, %cst {dimension_numbers = #tpu.dot_dimension_numbers<[1], [0], [0], [1], [0, 0, 1, 1], [], []>} : vector<64x7xbf16>, vector<7x8xbf16>, vector<64x8xf32> -> vector<64x8xf32>
    %c0_3 = arith.constant 0 : index
    %c0_4 = arith.constant 0 : index
    %4 = vector.load %arg3[%c0_3, %c0_4] : memref<64x1xf32, #tpu.memory_space<vmem>>, vector<64x1xf32>
    %5 = vector.broadcast %4 : vector<64x1xf32> to vector<64x8xf32>
    %6 = arith.addf %3, %5 : vector<64x8xf32>
    %cst_5 = arith.constant 0.000000e+00 : f32
    %7 = vector.broadcast %cst_5 : f32 to vector<64x8xf32>
    %8 = arith.maximumf %6, %7 : vector<64x8xf32>
    %c0_6 = arith.constant 0 : index
    %c0_7 = arith.constant 0 : index
    %9 = vector.load %arg4[%c0_6, %c0_7] : memref<32x64xbf16, #tpu.memory_space<vmem>>, vector<32x64xbf16>
    %10 = arith.truncf %8 : vector<64x8xf32> to vector<64x8xbf16>
    %cst_8 = arith.constant dense<0.000000e+00> : vector<32x8xf32>
    %11 = tpu.matmul %9, %10, %cst_8 {dimension_numbers = #tpu.dot_dimension_numbers<[1], [0], [0], [1], [0, 0, 1, 1], [], []>} : vector<32x64xbf16>, vector<64x8xbf16>, vector<32x8xf32> -> vector<32x8xf32>
    %c0_9 = arith.constant 0 : index
    %c0_10 = arith.constant 0 : index
    %12 = vector.load %arg5[%c0_9, %c0_10] : memref<32x1xf32, #tpu.memory_space<vmem>>, vector<32x1xf32>
    %13 = vector.broadcast %12 : vector<32x1xf32> to vector<32x8xf32>
    %14 = arith.addf %11, %13 : vector<32x8xf32>
    %cst_11 = arith.constant 0.000000e+00 : f32
    %15 = vector.broadcast %cst_11 : f32 to vector<32x8xf32>
    %16 = arith.maximumf %14, %15 : vector<32x8xf32>
    %c0_12 = arith.constant 0 : index
    %c0_13 = arith.constant 0 : index
    %17 = vector.load %arg6[%c0_12, %c0_13] : memref<1x32xbf16, #tpu.memory_space<vmem>>, vector<1x32xbf16>
    %18 = arith.truncf %16 : vector<32x8xf32> to vector<32x8xbf16>
    %cst_14 = arith.constant dense<0.000000e+00> : vector<1x8xf32>
    %19 = tpu.matmul %17, %18, %cst_14 {dimension_numbers = #tpu.dot_dimension_numbers<[1], [0], [0], [1], [0, 0, 1, 1], [], []>} : vector<1x32xbf16>, vector<32x8xbf16>, vector<1x8xf32> -> vector<1x8xf32>
    %c0_15 = arith.constant 0 : index
    %c0_16 = arith.constant 0 : index
    %20 = vector.load %arg7[%c0_15, %c0_16] : memref<1x1xf32, #tpu.memory_space<vmem>>, vector<1x1xf32>
    %21 = vector.broadcast %20 : vector<1x1xf32> to vector<1x8xf32>
    %22 = arith.addf %19, %21 : vector<1x8xf32>
    %c0_17 = arith.constant 0 : index
    %c0_18 = arith.constant 0 : index
    %23 = vector.load %arg8[%c0_17, %c0_18] : memref<1x8xf32, #tpu.memory_space<vmem>>, vector<1x8xf32>
    tpu.vector_store %arg8[%c0_17, %c0_18], %22 {strides = array<i32>} : memref<1x8xf32, #tpu.memory_space<vmem>>, vector<1x8xf32>,
    return
  }
  func.func @transform_0(%arg0: i32) -> (i32, i32) {
    %c0_i32 = arith.constant 0 : i32
    %c0_i32_0 = arith.constant 0 : i32
    return %c0_i32, %arg0 : i32, i32
  }
  func.func @transform_1(%arg0: i32) -> (i32, i32) {
    %c0_i32 = arith.constant 0 : i32
    %c0_i32_0 = arith.constant 0 : i32
    %c0_i32_1 = arith.constant 0 : i32
    return %c0_i32, %c0_i32_0 : i32, i32
  }
  func.func @transform_2(%arg0: i32) -> (i32, i32) {
    %c0_i32 = arith.constant 0 : i32
    %c0_i32_0 = arith.constant 0 : i32
    %c0_i32_1 = arith.constant 0 : i32
    return %c0_i32, %c0_i32_0 : i32, i32
  }
  func.func @transform_3(%arg0: i32) -> (i32, i32) {
    %c0_i32 = arith.constant 0 : i32
    %c0_i32_0 = arith.constant 0 : i32
    %c0_i32_1 = arith.constant 0 : i32
    return %c0_i32, %c0_i32_0 : i32, i32
  }
  func.func @transform_4(%arg0: i32) -> (i32, i32) {
    %c0_i32 = arith.constant 0 : i32
    %c0_i32_0 = arith.constant 0 : i32
    %c0_i32_1 = arith.constant 0 : i32
    return %c0_i32, %c0_i32_0 : i32, i32
  }
  func.func @transform_5(%arg0: i32) -> (i32, i32) {
    %c0_i32 = arith.constant 0 : i32
    %c0_i32_0 = arith.constant 0 : i32
    %c0_i32_1 = arith.constant 0 : i32
    return %c0_i32, %c0_i32_0 : i32, i32
  }
  func.func @transform_6(%arg0: i32) -> (i32, i32) {
    %c0_i32 = arith.constant 0 : i32
    %c0_i32_0 = arith.constant 0 : i32
    %c0_i32_1 = arith.constant 0 : i32
    return %c0_i32, %c0_i32_0 : i32, i32
  }
  func.func @transform_7(%arg0: i32) -> (i32, i32) {
    %c0_i32 = arith.constant 0 : i32
    %c0_i32_0 = arith.constant 0 : i32
    return %c0_i32, %arg0 : i32, i32
  }
}

</mosaic_0001>

<llo_original>
// kernel: tpu_custom_call.1
$region0: #{tpu_custom_call.1}
  #allocation0 [shape = 'u32[]', space=smem, size = 0x4, offset = 0x4, fixed_abs, tag = 'smem constant byte address 0x4 - core index']
  #allocation1 [shape = 'u32[72,128]{1,0:T(1,128)}', space=vmem, size = 0x9000, scoped, tag = 'internal scratch']
  #allocation2 [shape = 'f32[1,1]{1,0:T(1,128)S(1)}', space=vmem, size = 0x200, scoped, tag = 'scoped memory for tpu_custom_call.1']
  %s0 = inlined_call_operand.vmem [shape: f32[7,8], index: 0, kind: input, shape index: {}]
  %s1 = inlined_call_operand.vmem [shape: bf16[64,7], index: 1, kind: input, shape index: {}]
  %s2 = inlined_call_operand.vmem [shape: f32[64,1], index: 2, kind: input, shape index: {}]
  %s3 = inlined_call_operand.vmem [shape: bf16[32,64], index: 3, kind: input, shape index: {}]
  %s4 = inlined_call_operand.vmem [shape: f32[32,1], index: 4, kind: input, shape index: {}]
  %s5 = inlined_call_operand.vmem [shape: bf16[1,32], index: 5, kind: input, shape index: {}]
  %s6 = inlined_call_operand.<no memory space> [shape: f32[1,1], index: 6, kind: input, shape index: {}]
  %s7 = inlined_call_operand.hbm [shape: f32[1,8], index: 7, kind: output, shape index: {}]
  %s8 = sld [smem:[#allocation0]]
  $region38: #{tpu_custom_call.1} parent=0
    _
  %s10 = ssub.s32 1, %s8
  %s11 = scalar_select 0, %s10, %s8
  %v12 = vstv %s6
  %13 = vst [vmem:[#allocation2] sm:$0x1] %v12
  $region1: #{tpu_custom_call.1} parent=0
    #allocation3 [shape = 'u8[512]{0}', space=vmem, size = 0x400, scoped, tag = 'output window, operand 0, single buffered']
    #allocation4 [shape = 's32[1]{0}', space=sflag, size = 0x4, scoped, tag = 'scoped memory for tpu_custom_call.1']
    %14 = vsyncpa [#allocation4], 0
    // Predicated region
    $region2: #{tpu_custom_call.1} parent=1 // pred_check
      _
    $region3: #{tpu_custom_call.1} parent=1 // pred_check_branch
      %16 = sbr.rel (0) target = $region5
    $region4: #{tpu_custom_call.1} parent=1 // pred_region
      _
    $region5: #{tpu_custom_call.1} parent=1 // pred_fallthru
      _
    // Predicated region
    $region6: #{tpu_custom_call.1} parent=1 // pred_check
      _
    $region7: #{tpu_custom_call.1} parent=1 // pred_check_branch
      %18 = sbr.rel (0) target = $region9
    $region8: #{tpu_custom_call.1} parent=1 // pred_region
      _
    $region9: #{tpu_custom_call.1} parent=1 // pred_fallthru
      _
    // Predicated region
    $region10: #{tpu_custom_call.1} parent=1 // pred_check
      _
    $region11: #{tpu_custom_call.1} parent=1 // pred_check_branch
      %20 = sbr.rel (0) target = $region13
    $region12: #{tpu_custom_call.1} parent=1 // pred_region
      _
    $region13: #{tpu_custom_call.1} parent=1 // pred_fallthru
      _
    // Predicated region
    $region14: #{tpu_custom_call.1} parent=1 // pred_check
      _
    $region15: #{tpu_custom_call.1} parent=1 // pred_check_branch
      %22 = sbr.rel (0) target = $region17
    $region16: #{tpu_custom_call.1} parent=1 // pred_region
      _
    $region17: #{tpu_custom_call.1} parent=1 // pred_fallthru
      _
    // Predicated region
    $region18: #{tpu_custom_call.1} parent=1 // pred_check
      _
    $region19: #{tpu_custom_call.1} parent=1 // pred_check_branch
      %24 = sbr.rel (0) target = $region21
    $region20: #{tpu_custom_call.1} parent=1 // pred_region
      _
    $region21: #{tpu_custom_call.1} parent=1 // pred_fallthru
      _
    // Predicated region
    $region22: #{tpu_custom_call.1} parent=1 // pred_check
      _
    $region23: #{tpu_custom_call.1} parent=1 // pred_check_branch
      %26 = sbr.rel (0) target = $region25
    $region24: #{tpu_custom_call.1} parent=1 // pred_region
      _
    $region25: #{tpu_custom_call.1} parent=1 // pred_fallthru
      _
    // Predicated region
    $region26: #{tpu_custom_call.1} parent=1 // pred_check
      _
    $region27: #{tpu_custom_call.1} parent=1 // pred_check_branch
      %28 = sbr.rel (0) target = $region29
    $region28: #{tpu_custom_call.1} parent=1 // pred_region
      _
    $region29: #{tpu_custom_call.1} parent=1 // pred_fallthru
      _
    %v30 = vld [vmem:[%s0] sm:$0x7f]
    %v31 = vpack.c.bf16 %v30, %v30
    %v32 = vld [vmem:[%s1] sm:$0xf]
    %v33 = vld [vmem:[%s1 + $0x4] sm:$0xf]
    %v34 = vld [vmem:[%s1 + $0x8] sm:$0xf]
    %v35 = vld [vmem:[%s1 + $0xc] sm:$0xf]
    %v36 = vld [vmem:[%s1 + $0x10] sm:$0xf]
    %v37 = vld [vmem:[%s1 + $0x14] sm:$0xf]
    %v38 = vld [vmem:[%s1 + $0x18] sm:$0xf]
    %v39 = vld [vmem:[%s1 + $0x1c] sm:$0xf]
    %v40 = vld [vmem:[%s2] sm:$0xff]
    %v41 = vld [vmem:[%s2 + $0x8] sm:$0xff]
    %v42 = vld [vmem:[%s2 + $0x10] sm:$0xff]
    %v43 = vld [vmem:[%s2 + $0x18] sm:$0xff]
    %v44 = vld [vmem:[%s2 + $0x20] sm:$0xff]
    %v45 = vld [vmem:[%s2 + $0x28] sm:$0xff]
    %v46 = vld [vmem:[%s2 + $0x30] sm:$0xff]
    %v47 = vld [vmem:[%s2 + $0x38] sm:$0xff]
    %49 = vset.pattern.permute.xlu0 0
    %50 = vperm.xlu0 %49, %v40
    %v51 = vpop.permute.xlu0 %50
    %54 = vset.pattern.permute.xlu0 0
    %55 = vperm.xlu0 %54, %v41
    %v56 = vpop.permute.xlu0 %55
    %59 = vset.pattern.permute.xlu0 0
    %60 = vperm.xlu0 %59, %v42
    %v61 = vpop.permute.xlu0 %60
    %64 = vset.pattern.permute.xlu0 0
    %65 = vperm.xlu0 %64, %v43
    %v66 = vpop.permute.xlu0 %65
    %69 = vset.pattern.permute.xlu0 0
    %70 = vperm.xlu0 %69, %v44
    %v71 = vpop.permute.xlu0 %70
    %74 = vset.pattern.permute.xlu0 0
    %75 = vperm.xlu0 %74, %v45
    %v76 = vpop.permute.xlu0 %75
    %79 = vset.pattern.permute.xlu0 0
    %80 = vperm.xlu0 %79, %v46
    %v81 = vpop.permute.xlu0 %80
    %84 = vset.pattern.permute.xlu0 0
    %85 = vperm.xlu0 %84, %v47
    %v86 = vpop.permute.xlu0 %85
    %v96 = vunpack.c.l.b16 %v32
    %v97 = vunpack.c.l.b16 %v33
    %v98 = vunpack.c.l.b16 %v34
    %v99 = vunpack.c.l.b16 %v35
    %v100 = vunpack.c.l.b16 %v36
    %v101 = vunpack.c.l.b16 %v37
    %v102 = vunpack.c.l.b16 %v38
    %v103 = vunpack.c.l.b16 %v39
    %v104 = vpack.c.b16 %v97, %v96
    %v105 = vpack.c.b16 %v99, %v98
    %v106 = vpack.c.b16 %v101, %v100
    %v107 = vpack.c.b16 %v103, %v102
    %vm108 = vcmask 56320
    %v110 = vsel %vm108, %v104, 0
    %v113 = vsel %vm108, %v105, 0
    %v116 = vsel %vm108, %v106, 0
    %v119 = vsel %vm108, %v107, 0
    %vm121 = vcmask 1042432
    %vm122 = vcmask 1043456
    %v123 = vsel %vm121, 4294967295, 65535
    %v124 = vsel %vm122, %v123, 0
    %v126 = vand.u32 %v31, %v124
    %128 = vmatpush.bf16.msra.mxu0 0
    %129 = vmatpush.bf16.msra.mxu0 0
    %130 = vmatpush.bf16.msra.mxu0 0
    %131 = vmatpush.bf16.msra.mxu0 0
    %132 = vmatpush.bf16.msra.mxu0 0
    %133 = vmatpush.bf16.msra.mxu0 0
    %134 = vmatpush.bf16.msra.mxu0 0
    %135 = vmatpush.bf16.msra.mxu0 %v126
    %136 = vmatmul.bf16.gmra.mxu0 %v110
    %v137 = vpop.f32.mrf.mxu0
    %v138 = vadd.f32 %v51, %v137
    %v139 = vpop.f32.mrf.mxu0
    %v140 = vadd.f32 %v56, %v139
    %141 = vmatmul.bf16.gmra.mxu0 %v113
    %v142 = vpop.f32.mrf.mxu0
    %v143 = vadd.f32 %v61, %v142
    %v144 = vpop.f32.mrf.mxu0
    %v145 = vadd.f32 %v66, %v144
    %146 = vmatmul.bf16.gmra.mxu0 %v116
    %v147 = vpop.f32.mrf.mxu0
    %v148 = vadd.f32 %v71, %v147
    %v149 = vpop.f32.mrf.mxu0
    %v150 = vadd.f32 %v76, %v149
    %151 = vmatmul.bf16.gmra.mxu0 %v119
    %v152 = vpop.f32.mrf.mxu0
    %v153 = vadd.f32 %v81, %v152
    %v154 = vpop.f32.mrf.mxu0
    %v155 = vadd.f32 %v86, %v154
    %156 = vdwg.mxu0
    %v157 = vmax.f32 %v138, 0.0
    %v158 = vmax.f32 %v140, 0.0
    %v159 = vmax.f32 %v143, 0.0
    %v160 = vmax.f32 %v145, 0.0
    %v161 = vmax.f32 %v148, 0.0
    %v162 = vmax.f32 %v150, 0.0
    %v163 = vmax.f32 %v153, 0.0
    %v164 = vmax.f32 %v155, 0.0
    %v165 = vld [vmem:[%s3] sm:$0xf]
    %v166 = vld [vmem:[%s3 + $0x4] sm:$0xf]
    %v167 = vld [vmem:[%s3 + $0x8] sm:$0xf]
    %v168 = vld [vmem:[%s3 + $0xc] sm:$0xf]
    %v169 = vpack.c.bf16 %v158, %v157
    %v170 = vpack.c.bf16 %v160, %v159
    %v171 = vpack.c.bf16 %v162, %v161
    %v172 = vpack.c.bf16 %v164, %v163
    %v173 = vld [vmem:[%s4] sm:$0xff]
    %v174 = vld [vmem:[%s4 + $0x8] sm:$0xff]
    %v175 = vld [vmem:[%s4 + $0x10] sm:$0xff]
    %v176 = vld [vmem:[%s4 + $0x18] sm:$0xff]
    %178 = vset.pattern.permute.xlu0 0
    %179 = vperm.xlu0 %178, %v173
    %v180 = vpop.permute.xlu0 %179
    %183 = vset.pattern.permute.xlu0 0
    %184 = vperm.xlu0 %183, %v174
    %v185 = vpop.permute.xlu0 %184
    %188 = vset.pattern.permute.xlu0 0
    %189 = vperm.xlu0 %188, %v175
    %v190 = vpop.permute.xlu0 %189
    %193 = vset.pattern.permute.xlu0 0
    %194 = vperm.xlu0 %193, %v176
    %v195 = vpop.permute.xlu0 %194
    %v201 = vunpack.c.l.b16 %v165
    %v202 = vunpack.c.l.b16 %v166
    %v203 = vunpack.c.l.b16 %v167
    %v204 = vunpack.c.l.b16 %v168
    %v205 = vpack.c.b16 %v202, %v201
    %v206 = vpack.c.b16 %v204, %v203
    %vm207 = vcmask 523264
    %v209 = vsel %vm207, %v205, 0
    %v212 = vsel %vm207, %v206, 0
    %214 = vmatpush.bf16.msra.mxu0 0
    %215 = vmatpush.bf16.msra.mxu0 0
    %216 = vmatpush.bf16.msra.mxu0 0
    %217 = vmatpush.bf16.msra.mxu0 0
    %218 = vmatpush.bf16.msra.mxu0 %v172
    %219 = vmatpush.bf16.msra.mxu0 %v171
    %220 = vmatpush.bf16.msra.mxu0 %v170
    %221 = vmatpush.bf16.msra.mxu0 %v169
    %222 = vmatmul.bf16.gmra.mxu0 %v209
    %v223 = vpop.f32.mrf.mxu0
    %v224 = vadd.f32 %v180, %v223
    %v225 = vpop.f32.mrf.mxu0
    %v226 = vadd.f32 %v185, %v225
    %227 = vmatmul.bf16.gmra.mxu0 %v212
    %v228 = vpop.f32.mrf.mxu0
    %v229 = vadd.f32 %v190, %v228
    %v230 = vpop.f32.mrf.mxu0
    %v231 = vadd.f32 %v195, %v230
    %232 = vdwg.mxu0
    %v233 = vmax.f32 %v224, 0.0
    %v234 = vmax.f32 %v226, 0.0
    %v235 = vmax.f32 %v229, 0.0
    %v236 = vmax.f32 %v231, 0.0
    %v237 = vld [vmem:[%s5] sm:$0x1]
    %v238 = vpack.c.bf16 %v234, %v233
    %v239 = vpack.c.bf16 %v236, %v235
    %v240 = vld [vmem:[#allocation2] sm:$0x1]
    %242 = vset.pattern.permute.xlu0 0
    %243 = vperm.xlu0 %242, %v240
    %v244 = vpop.permute.xlu0 %243
    %v246 = vperm.slane %v244, 0
    %vm247 = vcmask 261120
    %v249 = vsel %vm247, %v237, 0
    %251 = vmatpush.bf16.msra.mxu0 0
    %252 = vmatpush.bf16.msra.mxu0 0
    %253 = vmatpush.bf16.msra.mxu0 0
    %254 = vmatpush.bf16.msra.mxu0 0
    %255 = vmatpush.bf16.msra.mxu0 0
    %256 = vmatpush.bf16.msra.mxu0 0
    %257 = vmatpush.bf16.msra.mxu0 %v239
    %258 = vmatpush.bf16.msra.mxu0 %v238
    %259 = vmatmul.bf16.gmra.mxu0 %v249
    %v260 = vpop.f32.mrf.mxu0
    %v261 = vadd.f32 %v246, %v260
    %v262 = vpop.f32.mrf.mxu0
    %263 = vdwg.mxu0
    %vm264 = vcmask 57344
    %265 = vst.msk [vmem:[#allocation3] sm:$0x1] %vm264, %v261
    // Predicated region
    $region30: #{tpu_custom_call.1} parent=1 // pred_check
      _
    $region31: #{tpu_custom_call.1} parent=1 // pred_check_branch
      %267 = sbr.rel (0) target = $region33
    $region32: #{tpu_custom_call.1} parent=1 // pred_region
      %269 = vsyncadd [#allocation4], 0
      %s271 = sshll.u32 [#allocation3], 4
      %s272 = int_to_ptr.vmem [resolvable:$true] %s271
      %s273 = sshll.u32 %s7, 4
      %s274 = int_to_ptr.hbm [resolvable:$true] %s273
      %276 = dma.vmem_to_hbm [thread:$0]  %s272, 16, %s274, [#allocation4]
    $region33: #{tpu_custom_call.1} parent=1 // pred_fallthru
      _
    // Predicated region
    $region34: #{tpu_custom_call.1} parent=1 // pred_check
      _
    $region35: #{tpu_custom_call.1} parent=1 // pred_check_branch
      %278 = sbr.rel (0) target = $region37
    $region36: #{tpu_custom_call.1} parent=1 // pred_region
      %280 = dma.done [#allocation4], 16
    $region37: #{tpu_custom_call.1} parent=1 // pred_fallthru
      _
    %281 = vsyncpa [#allocation4], 1

</llo_original>
